<compile_context>
chip_gen: v7x
topology: tpu7x:2x2x1
jax: 0.10.0
libtpu: 0.0.40
codegen_flags: <defaults>
</compile_context>

<pallas_src>
import jax
import jax.numpy as jnp
from jax import lax
from jax.experimental import pallas as pl
from jax.experimental.pallas import tpu as pltpu


def _qmix_kernel(qs_ref, st_ref, w_ref, b_ref, vw2b_ref, q_ref):
    """One row-tile (TB batch rows) of the QMixer forward, batch-on-lanes.

    qs_ref   : (1, TB)           sum of per-agent Qs (precomputed in the wrapper)
    st_ref   : (state_dim, TB)   states tile, transposed (batch on lanes)
    w_ref    : (E+3, state_dim)  rows 0..E-1 = V.layer1 W, row E = hyper_w_1,
                                 row E+1 = hyper_b_1, row E+2 = hyper_w_final
    b_ref    : (E+3, 1)          matching packed biases (f32)
    vw2b_ref : (E+1, 1)          rows 0..E-1 = V.layer2 W, row E = V.layer2 bias (f32)
    q_ref    : (1, TB)           lane-dense output row
    """
    E = w_ref.shape[0] - 3

    # Single fused state-side matmul in the native contraction form: the states tile
    # is already (state_dim, TB), so no in-kernel relayout is needed and the batch
    # lands on the lane axis.  f32 accumulation even for bf16 inputs.
    fused = lax.dot_general(
        w_ref[...], st_ref[...],
        dimension_numbers=(((1,), (0,)), ((), ())),
        preferred_element_type=jnp.float32)                  # (E+3, TB) f32
    fused = fused + b_ref[...]                               # lane-broadcast bias add

    h = jnp.maximum(fused[:E, :], 0.0)                       # V layer-1 + ReLU, (E, TB)
    w1 = jnp.abs(fused[E:E + 1, :])                          # |hyper_w_1(s)|,   (1, TB)
    b1 = fused[E + 1:E + 2, :]                               # hyper_b_1(s),     (1, TB)
    wf = jnp.abs(fused[E + 2:E + 3, :])                      # |hyper_w_final|,  (1, TB)

    # Second V layer: VPU multiply + sublane reduce (avoids a width-1 MXU matmul).
    vw2 = vw2b_ref[:E, :]                                    # (E, 1)
    vb2 = vw2b_ref[E:E + 1, :]                               # (1, 1)
    v = jnp.sum(h * vw2, axis=0, keepdims=True) + vb2        # (1, TB)

    qs_sum = qs_ref[...].astype(jnp.float32)                 # (1, TB)

    # hidden = elu(qs_sum * w1 + b1); y = hidden * w_final + v
    x = qs_sum * w1 + b1
    hidden = jnp.where(x > 0.0, x, jnp.exp(jnp.minimum(x, 0.0)) - 1.0)
    q_ref[...] = (hidden * wf + v).astype(q_ref.dtype)


@jax.jit
def qmix_forward(agent_qs, states, params):
    """agent_qs: (bs, T, n_agents), states: (bs, T, *state_shape) -> (bs, T, 1)."""
    bs, T = agent_qs.shape[0], agent_qs.shape[1]
    n_agents = agent_qs.shape[-1]

    aq = agent_qs.reshape(-1, n_agents)                 # (B, n_agents), native dtype
    B = aq.shape[0]
    st = states.reshape(B, -1)                          # (B, state_dim), native dtype
    state_dim = st.shape[1]

    # Sum over agents precomputed as a lane-dense (1, B) row (fuses with the reshape;
    # removes the strided agent_qs transpose and cuts its HBM traffic n_agents x).
    qs_sum = jnp.sum(aq, axis=-1).reshape(1, B)

    # Transpose states so the kernel tile is (state_dim, rt): batch on the 128-lane
    # axis, contraction dim already on rhs rows -> no per-step XLU relayout.
    st_t = st.T                                         # (state_dim, B)

    itemsize = jnp.dtype(st.dtype).itemsize

    # ---- auto-sized row tile (HBM-bound kernel) --------------------------------
    target_tile_bytes = 2 * 1024 * 1024                 # ~2 MiB of states per step
    rt = target_tile_bytes // max(1, state_dim * itemsize)
    rt = max(128, min(8192, (rt // 128) * 128))
    b_blocks = pl.cdiv(B, 128)
    rt = min(rt, b_blocks * 128)                        # don't exceed padded batch
    if b_blocks >= 2:
        # Keep >= 2 row tiles so the "parallel" axis can shard across v7x's 2 TCs.
        rt = min(rt, pl.cdiv(b_blocks, 2) * 128)
    rt = max(rt, 128)
    num_tiles = pl.cdiv(B, rt)
    B_pad = num_tiles * rt
    # NOTE: no jnp.pad of states/qs_sum — Pallas handles the ragged last block; the
    # OOB lanes hold unspecified values, sliced off below (no cross-lane coupling).

    out_dtype = agent_qs.dtype
    w_fused = params["w_fused_t"].astype(st.dtype)      # tiny one-time cast
    b_fused = params["b_fused_t"].astype(jnp.float32)
    vw2b = params["vw2b"].astype(jnp.float32)

    out = pl.pallas_call(
        _qmix_kernel,
        out_shape=jax.ShapeDtypeStruct((1, B_pad), out_dtype),
        grid_spec=pltpu.PrefetchScalarGridSpec(
            num_scalar_prefetch=0,
            grid=(num_tiles,),
            in_specs=[
                pl.BlockSpec((1, rt), lambda i: (0, i)),            # qs_sum row tile
                pl.BlockSpec((state_dim, rt), lambda i: (0, i)),    # states^T tile
                pl.BlockSpec(w_fused.shape, lambda i: (0, 0)),      # fused hypernet+V1 W
                pl.BlockSpec(b_fused.shape, lambda i: (0, 0)),      # fused biases
                pl.BlockSpec(vw2b.shape, lambda i: (0, 0)),         # V2 weight + bias
            ],
            out_specs=pl.BlockSpec((1, rt), lambda i: (0, i)),      # lane-dense output
        ),
        compiler_params=pltpu.CompilerParams(
            dimension_semantics=("parallel",),          # megacore-shardable row tiles
            # Actual footprint is a few MiB with the auto-sized tiles; 32 MiB scoped
            # VMEM is safe on v5e/v6e/v7x and overrides v5e's 16 MiB default.
            vmem_limit_bytes=32 * 1024 * 1024,
        ),
    )(qs_sum, st_t, w_fused, b_fused, vw2b)

    return out[0, :B].reshape(bs, T, 1)


def init_params(key, state_dim, embed_dim):
    """Deterministic synthetic parameters, packed for the fused kernel layout."""
    ks = jax.random.split(key, 10)

    def lin_t(kw, kb, fan_in, fan_out):
        bound = 1.0 / jnp.sqrt(fan_in)
        w_t = jax.random.uniform(kw, (fan_out, fan_in), jnp.float32, -bound, bound)
        b = jax.random.uniform(kb, (fan_out, 1), jnp.float32, -bound, bound)
        return w_t, b

    v_w1_t, v_b1 = lin_t(ks[0], ks[1], state_dim, embed_dim)   # V[0]
    w1_t, w1_b = lin_t(ks[2], ks[3], state_dim, 1)             # hyper_w_1
    b1_t, b1_b = lin_t(ks[4], ks[5], state_dim, 1)             # hyper_b_1
    wf_t, wf_b = lin_t(ks[6], ks[7], state_dim, 1)             # hyper_w_final
    v_w2_t, v_b2 = lin_t(ks[8], ks[9], embed_dim, 1)           # V[2]

    return {
        # rows: [V layer-1 (E rows) | hyper_w_1 | hyper_b_1 | hyper_w_final]
        "w_fused_t": jnp.concatenate([v_w1_t, w1_t, b1_t, wf_t], axis=0),  # (E+3, S)
        "b_fused_t": jnp.concatenate([v_b1, w1_b, b1_b, wf_b], axis=0),    # (E+3, 1)
        # rows: [V layer-2 weight (E rows) | V layer-2 bias]
        "vw2b": jnp.concatenate([v_w2_t.T, v_b2], axis=0),                 # (E+1, 1)
    }


def qmix_reference(agent_qs, states, params):
    """Pure-JAX f32 reference mirroring the torch QMixer forward."""
    bs = agent_qs.shape[0]
    n_agents = agent_qs.shape[-1]
    aq = agent_qs.reshape(-1, n_agents).astype(jnp.float32)
    st = states.reshape(aq.shape[0], -1).astype(jnp.float32)

    W = params["w_fused_t"]                      # (E+3, S)
    bvec = params["b_fused_t"][:, 0]             # (E+3,)
    E = params["vw2b"].shape[0] - 1
    vw2 = params["vw2b"][:E, 0]                  # (E,)
    vb2 = params["vw2b"][E, 0]

    lin = st @ W.T + bvec                        # (B, E+3)
    h = jnp.maximum(lin[:, :E], 0.0)
    w1 = jnp.abs(lin[:, E:E + 1])
    b1 = lin[:, E + 1:E + 2]
    wf = jnp.abs(lin[:, E + 2:E + 3])
    v = h @ vw2[:, None] + vb2

    qs_sum = jnp.sum(aq, axis=-1, keepdims=True)
    x = qs_sum * w1 + b1
    hidden = jnp.where(x > 0.0, x, jnp.exp(jnp.minimum(x, 0.0)) - 1.0)  # ELU
    return (hidden * wf + v).reshape(bs, -1, 1)


if __name__ == "__main__":
    # Small shapes consistent with the module: bs=2, T=8, n_agents=4,
    # state_shape=(32,) -> state_dim=32, mixing_embed_dim=32.
    bs, T, n_agents, state_dim, embed_dim = 2, 8, 4, 32, 32

    key = jax.random.PRNGKey(0)
    k_aq, k_st, k_p = jax.random.split(key, 3)
    agent_qs = jax.random.normal(k_aq, (bs, T, n_agents), jnp.float32)
    states = jax.random.normal(k_st, (bs, T, state_dim), jnp.float32)
    params = init_params(k_p, state_dim, embed_dim)

    ref = qmix_reference(agent_qs, states, params)

    # f32 inputs (B=16 < rt, so this also exercises the ragged/clamped last block).
    q_tot = qmix_forward(agent_qs, states, params)
    jax.block_until_ready(q_tot)
    assert q_tot.shape == (bs, T, 1)
    assert jnp.allclose(q_tot, ref, atol=1e-4, rtol=1e-4), float(
        jnp.max(jnp.abs(q_tot - ref)))

    # bf16 inputs: halves the dominant HBM stream; MXU still accumulates in f32.
    q_bf16 = qmix_forward(agent_qs.astype(jnp.bfloat16),
                          states.astype(jnp.bfloat16), params)
    jax.block_until_ready(q_bf16)
    assert q_bf16.shape == (bs, T, 1)
    assert jnp.allclose(q_bf16.astype(jnp.float32), ref, atol=1.5e-1, rtol=1.5e-1), float(
        jnp.max(jnp.abs(q_bf16.astype(jnp.float32) - ref)))

    print("KERNEL_OK")
</pallas_src>

<mosaic_0001>
module attributes {stable_mosaic.version = 11 : i64} {
  func.func @_qmix_kernel(%arg0: i32, %arg1: memref<1x128xf32, #tpu.memory_space<vmem>>, %arg2: memref<32x128xf32, #tpu.memory_space<vmem>>, %arg3: memref<35x32xf32, #tpu.memory_space<vmem>>, %arg4: memref<35x1xf32, #tpu.memory_space<vmem>>, %arg5: memref<33x1xf32, #tpu.memory_space<vmem>>, %arg6: memref<1x128xf32, #tpu.memory_space<vmem>>) attributes {dimension_semantics = [#tpu.dimension_semantics<parallel>], iteration_bounds = array<i64: 1>, scalar_prefetch = 0 : i64, scratch_operands = 0 : i64, tpu.core_type = #tpu.core_type<tc>, window_params = [{transform_indices = @transform_0, window_bounds = array<i64: 1, 128>}, {transform_indices = @transform_1, window_bounds = array<i64: 32, 128>}, {pipeline_mode = #tpu.pipeline_mode<synchronous>, transform_indices = @transform_2, window_bounds = array<i64: 35, 32>}, {pipeline_mode = #tpu.pipeline_mode<synchronous>, transform_indices = @transform_3, window_bounds = array<i64: 35, 1>}, {pipeline_mode = #tpu.pipeline_mode<synchronous>, transform_indices = @transform_4, window_bounds = array<i64: 33, 1>}, {transform_indices = @transform_5, window_bounds = array<i64: 1, 128>}]} {
    %c0 = arith.constant 0 : index
    %c0_0 = arith.constant 0 : index
    %0 = vector.load %arg3[%c0, %c0_0] : memref<35x32xf32, #tpu.memory_space<vmem>>, vector<35x32xf32>
    %c0_1 = arith.constant 0 : index
    %c0_2 = arith.constant 0 : index
    %1 = vector.load %arg2[%c0_1, %c0_2] : memref<32x128xf32, #tpu.memory_space<vmem>>, vector<32x128xf32>
    %cst = arith.constant dense<0.000000e+00> : vector<35x128xf32>
    %2 = tpu.matmul %0, %1, %cst {dimension_numbers = #tpu.dot_dimension_numbers<[1], [0], [0], [1], [0, 0, 1, 1], [], []>} : vector<35x32xf32>, vector<32x128xf32>, vector<35x128xf32> -> vector<35x128xf32>
    %c0_3 = arith.constant 0 : index
    %c0_4 = arith.constant 0 : index
    %3 = vector.load %arg4[%c0_3, %c0_4] : memref<35x1xf32, #tpu.memory_space<vmem>>, vector<35x1xf32>
    %4 = vector.broadcast %3 : vector<35x1xf32> to vector<35x128xf32>
    %5 = arith.addf %2, %4 : vector<35x128xf32>
    %6 = vector.extract_strided_slice %5 {offsets = [0, 0], sizes = [32, 128], strides = [1, 1]} : vector<35x128xf32> to vector<32x128xf32>
    %cst_5 = arith.constant 0.000000e+00 : f32
    %7 = vector.broadcast %cst_5 : f32 to vector<32x128xf32>
    %8 = arith.maximumf %6, %7 : vector<32x128xf32>
    %9 = vector.extract_strided_slice %5 {offsets = [32, 0], sizes = [1, 128], strides = [1, 1]} : vector<35x128xf32> to vector<1x128xf32>
    %10 = math.absf %9 : vector<1x128xf32>
    %11 = vector.extract_strided_slice %5 {offsets = [33, 0], sizes = [1, 128], strides = [1, 1]} : vector<35x128xf32> to vector<1x128xf32>
    %12 = vector.extract_strided_slice %5 {offsets = [34, 0], sizes = [1, 128], strides = [1, 1]} : vector<35x128xf32> to vector<1x128xf32>
    %13 = math.absf %12 : vector<1x128xf32>
    %c0_6 = arith.constant 0 : index
    %c0_7 = arith.constant 0 : index
    %14 = vector.load %arg5[%c0_6, %c0_7] : memref<33x1xf32, #tpu.memory_space<vmem>>, vector<32x1xf32>
    %c32 = arith.constant 32 : index
    %c0_8 = arith.constant 0 : index
    %15 = vector.load %arg5[%c32, %c0_8] : memref<33x1xf32, #tpu.memory_space<vmem>>, vector<1x1xf32>
    %16 = vector.broadcast %14 : vector<32x1xf32> to vector<32x128xf32>
    %17 = arith.mulf %8, %16 : vector<32x128xf32>
    %cst_9 = arith.constant dense<0.000000e+00> : vector<128xf32>
    %18 = vector.multi_reduction <add>, %17, %cst_9 [0] : vector<32x128xf32> to vector<128xf32>
    %19 = vector.shape_cast %18 : vector<128xf32> to vector<1x128xf32>
    %20 = vector.broadcast %15 : vector<1x1xf32> to vector<1x128xf32>
    %21 = arith.addf %19, %20 : vector<1x128xf32>
    %c0_10 = arith.constant 0 : index
    %c0_11 = arith.constant 0 : index
    %22 = vector.load %arg1[%c0_10, %c0_11] : memref<1x128xf32, #tpu.memory_space<vmem>>, vector<1x128xf32>
    %23 = arith.mulf %22, %10 : vector<1x128xf32>
    %24 = arith.addf %23, %11 : vector<1x128xf32>
    %cst_12 = arith.constant 0.000000e+00 : f32
    %25 = vector.broadcast %cst_12 : f32 to vector<1x128xf32>
    %26 = arith.cmpf ogt, %24, %25 : vector<1x128xf32>
    %cst_13 = arith.constant 0.000000e+00 : f32
    %27 = vector.broadcast %cst_13 : f32 to vector<1x128xf32>
    %28 = arith.minimumf %24, %27 : vector<1x128xf32>
    %29 = math.exp %28 : vector<1x128xf32>
    %cst_14 = arith.constant 1.000000e+00 : f32
    %30 = vector.broadcast %cst_14 : f32 to vector<1x128xf32>
    %31 = arith.subf %29, %30 : vector<1x128xf32>
    %32 = arith.select %26, %24, %31 : vector<1x128xi1>, vector<1x128xf32>
    %33 = arith.mulf %32, %13 : vector<1x128xf32>
    %34 = arith.addf %33, %21 : vector<1x128xf32>
    %c0_15 = arith.constant 0 : index
    %c0_16 = arith.constant 0 : index
    %35 = vector.load %arg6[%c0_15, %c0_16] : memref<1x128xf32, #tpu.memory_space<vmem>>, vector<1x128xf32>
    tpu.vector_store %arg6[%c0_15, %c0_16], %34 {strides = array<i32>} : memref<1x128xf32, #tpu.memory_space<vmem>>, vector<1x128xf32>,
    return
  }
  func.func @transform_0(%arg0: i32) -> (i32, i32) {
    %c0_i32 = arith.constant 0 : i32
    %c0_i32_0 = arith.constant 0 : i32
    return %c0_i32, %arg0 : i32, i32
  }
  func.func @transform_1(%arg0: i32) -> (i32, i32) {
    %c0_i32 = arith.constant 0 : i32
    %c0_i32_0 = arith.constant 0 : i32
    return %c0_i32, %arg0 : i32, i32
  }
  func.func @transform_2(%arg0: i32) -> (i32, i32) {
    %c0_i32 = arith.constant 0 : i32
    %c0_i32_0 = arith.constant 0 : i32
    %c0_i32_1 = arith.constant 0 : i32
    return %c0_i32, %c0_i32_0 : i32, i32
  }
  func.func @transform_3(%arg0: i32) -> (i32, i32) {
    %c0_i32 = arith.constant 0 : i32
    %c0_i32_0 = arith.constant 0 : i32
    %c0_i32_1 = arith.constant 0 : i32
    return %c0_i32, %c0_i32_0 : i32, i32
  }
  func.func @transform_4(%arg0: i32) -> (i32, i32) {
    %c0_i32 = arith.constant 0 : i32
    %c0_i32_0 = arith.constant 0 : i32
    %c0_i32_1 = arith.constant 0 : i32
    return %c0_i32, %c0_i32_0 : i32, i32
  }
  func.func @transform_5(%arg0: i32) -> (i32, i32) {
    %c0_i32 = arith.constant 0 : i32
    %c0_i32_0 = arith.constant 0 : i32
    return %c0_i32, %arg0 : i32, i32
  }
}

</mosaic_0001>

<llo_original>
// kernel: squeeze.1
$region0: #{squeeze.1}
  %s0 = inlined_call_operand.vmem [shape: f32[16], index: 0, kind: input, shape index: {}]
  %s1 = inlined_call_operand.hbm [shape: f32[2,8,1], index: 1, kind: output, shape index: {}]
  $region1: #{squeeze.1} parent=0
    #allocation0 [shape = 'u8[1024]{0}', space=vmem, size = 0x400, scoped, tag = 'operand span for operand 1']
    #allocation1 [shape = 's32[1]{0}', space=sflag, size = 0x4, scoped, tag = 'scoped memory for squeeze.1']
    #allocation2 [shape = 'u8[4096]{0}', space=vmem, size = 0x1000, scoped, tag = 'scoped mem for output reshape']
    #allocation3 [shape = 'u8[4096]{0}', space=vmem, size = 0x1000, scoped, tag = 'scoped mem for input reshape']
    %2 = vsyncpa [#allocation1], 0
    %s4 = sshllo.u32 0, 1
    %v5 = vld [vmem:[%s0] sm:%s4]
    %6 = vst [vmem:[#allocation3] sm:%s4] %v5
    %v7 = vld [vmem:[#allocation3] sm:$0x1]
    %vm8 = vcmask 64512
    %9 = vst.msk [vmem:[#allocation2] sm:$0x1] %vm8, %v7
    %v10 = vld [vmem:[#allocation3] sm:$0x1]
    %11 = vrot.lane.b32.xlu0 %v10, 120
    %v12 = vpop.permute.xlu0 %11
    %vm13 = vcmask 64512
    %s14 = scalar_lea.vmem [#allocation2], 1
    %15 = vst.msk [vmem:[%s14] sm:$0x1] %vm13, %v12
    %s17 = sshllo.u32 0, 2
    %v19 = vld [vmem:[#allocation2] sm:%s17]
    %s20 = sshllo.u32 0, 2
    %21 = vst [vmem:[#allocation0] sm:%s20] %v19
    %s23 = ssub.s32 32, 32
    %24 = vsyncadd [#allocation1], %s23
    %s26 = sshll.u32 [#allocation0], 4
    %s27 = int_to_ptr.vmem [resolvable:$true] %s26
    %29 = dma.vmem_to_hbm [thread:$0]  %s27, 32, %s1, [#allocation1]
    %30 = dma.done [#allocation1], 32
    %31 = vsyncpa [#allocation1], 1

// kernel: qmix_forward.1
$region0: #{qmix_forward.1}
  #allocation0 [shape = 'u32[]', space=smem, size = 0x4, offset = 0x4, fixed_abs, tag = 'smem constant byte address 0x4 - core index']
  #allocation1 [shape = 'u32[144,128]{1,0:T(1,128)}', space=vmem, size = 0x12000, scoped, tag = 'internal scratch']
  %s0 = inlined_call_operand.vmem [shape: f32[1,16], index: 0, kind: input, shape index: {}]
  %s1 = inlined_call_operand.vmem [shape: f32[32,16], index: 1, kind: input, shape index: {}]
  %s2 = inlined_call_operand.vmem [shape: f32[35,32], index: 2, kind: input, shape index: {}]
  %s3 = inlined_call_operand.vmem [shape: f32[35,1], index: 3, kind: input, shape index: {}]
  %s4 = inlined_call_operand.vmem [shape: f32[33,1], index: 4, kind: input, shape index: {}]
  %s5 = inlined_call_operand.vmem [shape: f32[1,128], index: 5, kind: output, shape index: {}]
  %s6 = sld [smem:[#allocation0]]
  $region30: #{qmix_forward.1} parent=0
    _
  %s8 = ssub.s32 1, %s6
  %s9 = scalar_select 0, %s8, %s6
  // Predicated region
  $region2: #{qmix_forward.1} parent=0 // pred_check
    _
  $region3: #{qmix_forward.1} parent=0 // pred_check_branch
    %11 = sbr.rel (0) target = $region5
  $region4: #{qmix_forward.1} parent=0 // pred_region
    _
  $region5: #{qmix_forward.1} parent=0 // pred_fallthru
    _
  // Predicated region
  $region6: #{qmix_forward.1} parent=0 // pred_check
    _
  $region7: #{qmix_forward.1} parent=0 // pred_check_branch
    %13 = sbr.rel (0) target = $region9
  $region8: #{qmix_forward.1} parent=0 // pred_region
    _
  $region9: #{qmix_forward.1} parent=0 // pred_fallthru
    _
  // Predicated region
  $region10: #{qmix_forward.1} parent=0 // pred_check
    _
  $region11: #{qmix_forward.1} parent=0 // pred_check_branch
    %15 = sbr.rel (0) target = $region13
  $region12: #{qmix_forward.1} parent=0 // pred_region
    _
  $region13: #{qmix_forward.1} parent=0 // pred_fallthru
    _
  // Predicated region
  $region14: #{qmix_forward.1} parent=0 // pred_check
    _
  $region15: #{qmix_forward.1} parent=0 // pred_check_branch
    %17 = sbr.rel (0) target = $region17
  $region16: #{qmix_forward.1} parent=0 // pred_region
    _
  $region17: #{qmix_forward.1} parent=0 // pred_fallthru
    _
  // Predicated region
  $region18: #{qmix_forward.1} parent=0 // pred_check
    _
  $region19: #{qmix_forward.1} parent=0 // pred_check_branch
    %19 = sbr.rel (0) target = $region21
  $region20: #{qmix_forward.1} parent=0 // pred_region
    _
  $region21: #{qmix_forward.1} parent=0 // pred_fallthru
    _
  %v20 = vld [vmem:[%s2] sm:$0xff]
  %v21 = vld [vmem:[%s2 + $0x8] sm:$0xff]
  %v22 = vld [vmem:[%s2 + $0x10] sm:$0xff]
  %v23 = vld [vmem:[%s2 + $0x18] sm:$0xff]
  %v24 = vld [vmem:[%s2 + $0x20] sm:$0x7]
  %v25 = vld [vmem:[%s1] sm:$0xff]
  %v26 = vld [vmem:[%s1 + $0x8] sm:$0xff]
  %v27 = vld [vmem:[%s1 + $0x10] sm:$0xff]
  %v28 = vld [vmem:[%s1 + $0x18] sm:$0xff]
  %v29 = vld [vmem:[%s3] sm:$0xff]
  %v30 = vld [vmem:[%s3 + $0x8] sm:$0xff]
  %v31 = vld [vmem:[%s3 + $0x10] sm:$0xff]
  %v32 = vld [vmem:[%s3 + $0x18] sm:$0xff]
  %v33 = vld [vmem:[%s3 + $0x20] sm:$0x7]
  %35 = vset.pattern.permute.xlu0 0
  %36 = vperm.xlu0 %35, %v29
  %v37 = vpop.permute.xlu0 %36
  %40 = vset.pattern.permute.xlu0 0
  %41 = vperm.xlu0 %40, %v30
  %v42 = vpop.permute.xlu0 %41
  %45 = vset.pattern.permute.xlu0 0
  %46 = vperm.xlu0 %45, %v31
  %v47 = vpop.permute.xlu0 %46
  %50 = vset.pattern.permute.xlu0 0
  %51 = vperm.xlu0 %50, %v32
  %v52 = vpop.permute.xlu0 %51
  %55 = vset.pattern.permute.xlu0 0
  %56 = vperm.xlu0 %55, %v33
  %v57 = vpop.permute.xlu0 %56
  %vm59 = vcmask 261120
  %v61 = vsel %vm59, %v20, 0
  %v64 = vsel %vm59, %v21, 0
  %v67 = vsel %vm59, %v22, 0
  %v70 = vsel %vm59, %v23, 0
  %v73 = vsel %vm59, %v24, 0
  %75 = vmatprep.subr.mxu0 0.0
  %76 = vmatpush1.msra.mxu0 %v25
  %77 = vmatprep.subr.mxu0 0.0
  %78 = vmatpush1.msra.mxu0 %v26
  %79 = vmatprep.subr.mxu0 0.0
  %80 = vmatpush1.msra.mxu0 %v27
  %81 = vmatprep.subr.mxu0 0.0
  %82 = vmatpush1.msra.mxu0 %v28
  %83 = vmatprep.subr.mxu0 0.0
  %84 = vmatpush1.msra.mxu0 0.0
  %85 = vmatprep.subr.mxu0 0.0
  %86 = vmatpush1.msra.mxu0 0.0
  %87 = vmatprep.subr.mxu0 0.0
  %88 = vmatpush1.msra.mxu0 0.0
  %89 = vmatprep.subr.mxu0 0.0
  %90 = vmatpush1.msra.mxu0 0.0
  %91 = vmatprep.subr.mxu0 0.0
  %92 = vmatpush1.msra.mxu0 0.0
  %93 = vmatprep.subr.mxu0 0.0
  %94 = vmatpush1.msra.mxu0 0.0
  %95 = vmatprep.subr.mxu0 0.0
  %96 = vmatpush1.msra.mxu0 0.0
  %97 = vmatprep.subr.mxu0 0.0
  %98 = vmatpush1.msra.mxu0 0.0
  %99 = vmatprep.subr.mxu0 0.0
  %100 = vmatpush1.msra.mxu0 0.0
  %101 = vmatprep.subr.mxu0 0.0
  %102 = vmatpush1.msra.mxu0 0.0
  %103 = vmatprep.subr.mxu0 0.0
  %104 = vmatpush1.msra.mxu0 0.0
  %105 = vmatprep.subr.mxu0 0.0
  %106 = vmatpush1.msra.mxu0 0.0
  %107 = vmatprep.subr.mxu0 0.0
  %108 = vmatpush1.msra.mxu0 0.0
  %109 = vmatprep.subr.mxu0 0.0
  %110 = vmatpush1.msra.mxu0 0.0
  %111 = vmatprep.subr.mxu0 0.0
  %112 = vmatpush1.msra.mxu0 0.0
  %113 = vmatprep.subr.mxu0 0.0
  %114 = vmatpush1.msra.mxu0 0.0
  %115 = vmatprep.subr.mxu0 0.0
  %116 = vmatpush1.msra.mxu0 0.0
  %117 = vmatprep.subr.mxu0 0.0
  %118 = vmatpush1.msra.mxu0 0.0
  %119 = vmatprep.subr.mxu0 0.0
  %120 = vmatpush1.msra.mxu0 0.0
  %121 = vmatprep.subr.mxu0 0.0
  %122 = vmatpush1.msra.mxu0 0.0
  %123 = vmatprep.subr.mxu0 0.0
  %124 = vmatpush1.msra.mxu0 0.0
  %125 = vmatprep.subr.mxu0 0.0
  %126 = vmatpush1.msra.mxu0 0.0
  %127 = vmatprep.subr.mxu0 0.0
  %128 = vmatpush1.msra.mxu0 0.0
  %129 = vmatprep.subr.mxu0 0.0
  %130 = vmatpush1.msra.mxu0 0.0
  %131 = vmatprep.subr.mxu0 0.0
  %132 = vmatpush1.msra.mxu0 0.0
  %133 = vmatprep.subr.mxu0 0.0
  %134 = vmatpush1.msra.mxu0 0.0
  %135 = vmatprep.subr.mxu0 0.0
  %136 = vmatpush1.msra.mxu0 0.0
  %137 = vmatprep.subr.mxu0 0.0
  %138 = vmatpush1.msra.mxu0 0.0
  %139 = vmatprep.mubr.f32.mxu0 0.0
  %140 = vmatmul.mubr.f32.gmra.mrb[0].mxu0 %v61
  %v141 = vpop.f32.mrb[0].mxu0
  %v142 = vadd.f32 %v37, %v141
  %v143 = vpop.f32.mrb[0].mxu0
  %144 = vmatprep.mubr.f32.mxu0 0.0
  %145 = vmatmul.mubr.f32.gmra.mrb[0].mxu0 %v64
  %v146 = vpop.f32.mrb[0].mxu0
  %v147 = vadd.f32 %v42, %v146
  %v148 = vpop.f32.mrb[0].mxu0
  %149 = vmatprep.mubr.f32.mxu0 0.0
  %150 = vmatmul.mubr.f32.gmra.mrb[0].mxu0 %v67
  %v151 = vpop.f32.mrb[0].mxu0
  %v152 = vadd.f32 %v47, %v151
  %v153 = vpop.f32.mrb[0].mxu0
  %154 = vmatprep.mubr.f32.mxu0 0.0
  %155 = vmatmul.mubr.f32.gmra.mrb[0].mxu0 %v70
  %v156 = vpop.f32.mrb[0].mxu0
  %v157 = vadd.f32 %v52, %v156
  %v158 = vpop.f32.mrb[0].mxu0
  %159 = vmatprep.mubr.f32.mxu0 0.0
  %160 = vmatmul.mubr.f32.gmra.mrb[0].mxu0 %v73
  %v161 = vpop.f32.mrb[0].mxu0
  %v162 = vadd.f32 %v57, %v161
  %v163 = vpop.f32.mrb[0].mxu0
  %164 = vdwg.mxu0
  %v165 = vmax.f32 %v142, 0.0
  %v166 = vmax.f32 %v147, 0.0
  %v167 = vmax.f32 %v152, 0.0
  %v168 = vmax.f32 %v157, 0.0
  %v169 = vand.u32 2147483647, %v162
  %v170 = vld [vmem:[%s4] sm:$0xff]
  %v171 = vld [vmem:[%s4 + $0x8] sm:$0xff]
  %v172 = vld [vmem:[%s4 + $0x10] sm:$0xff]
  %v173 = vld [vmem:[%s4 + $0x18] sm:$0xff]
  %v174 = vld [vmem:[%s4 + $0x20] sm:$0x1]
  %176 = vset.pattern.permute.xlu0 0
  %177 = vperm.xlu0 %176, %v170
  %v178 = vpop.permute.xlu0 %177
  %181 = vset.pattern.permute.xlu0 0
  %182 = vperm.xlu0 %181, %v171
  %v183 = vpop.permute.xlu0 %182
  %186 = vset.pattern.permute.xlu0 0
  %187 = vperm.xlu0 %186, %v172
  %v188 = vpop.permute.xlu0 %187
  %191 = vset.pattern.permute.xlu0 0
  %192 = vperm.xlu0 %191, %v173
  %v193 = vpop.permute.xlu0 %192
  %v195 = vmul.f32 %v165, %v178
  %v196 = vmul.f32 %v166, %v183
  %v197 = vmul.f32 %v167, %v188
  %v198 = vmul.f32 %v168, %v193
  %v199 = vadd.f32 %v195, %v196
  %v200 = vadd.f32 %v199, %v197
  %v201 = vadd.f32 %v200, %v198
  %v202 = vrot.slane %v201, 4
  %v203 = vadd.f32 %v201, %v202
  %v204 = vrot.slane %v203, 2
  %v205 = vadd.f32 %v203, %v204
  %v206 = vrot.slane %v205, 1
  %v207 = vadd.f32 %v205, %v206
  %209 = vset.pattern.permute.xlu0 0
  %210 = vperm.xlu0 %209, %v174
  %v211 = vpop.permute.xlu0 %210
  %v213 = vadd.f32 %v207, %v211
  %v214 = vld [vmem:[%s0] sm:$0x1]
  %v215 = vmul.f32 %v214, %v169
  %v218 = vunpack.c.l.s4 1966171168
  %v219 = vunpack.c.0.s8 %v218
  %v220 = vlaneseq
  %v221 = vshrl.u32 %v220, 7
  %v222 = vsub.s32 %v219, %v221
  %v223 = vrot.slane %v162, %v222
  %v224 = vcombine.high %v223, %v223
  %v226 = vunpack.c.l.s4 1966171168
  %v227 = vunpack.c.0.s8 %v226
  %v228 = vlaneseq
  %v229 = vshrl.u32 %v228, 7
  %v230 = vsub.s32 %v227, %v229
  %v231 = vrot.slane %v224, %v230
  %v233 = vadd.f32 %v215, %v231
  %vm234 = vcmp.gt.f32.partialorder %v233, 0.0
  %v235 = vmin.f32 %v233, 0.0
  %v236 = vmul.f32 %v235, 1.442695
  %v237 = vpow.pop %v236
  %v238 = vsub.f32 %v237, 1.0
  %v239 = vsel %vm234, %v233, %v238
  %v242 = vunpack.c.l.s4 1966171168
  %v243 = vunpack.c.0.s8 %v242
  %v244 = vlaneseq
  %v245 = vshrl.u32 %v244, 7
  %v246 = vsub.s32 %v243, %v245
  %v247 = vrot.slane %v169, %v246
  %v249 = vunpack.c.l.s4 1966171168
  %v250 = vunpack.c.0.s8 %v249
  %v251 = vlaneseq
  %v252 = vshrl.u32 %v251, 7
  %v253 = vsub.s32 %v250, %v252
  %v254 = vrot.slane %v247, %v253
  %v255 = vcombine.high %v254, %v254
  %v257 = vmul.f32 %v239, %v255
  %v258 = vadd.f32 %v257, %v213
  %259 = vst [vmem:[%s5] sm:$0x1] %v258
  // Predicated region
  $region22: #{qmix_forward.1} parent=0 // pred_check
    _
  $region23: #{qmix_forward.1} parent=0 // pred_check_branch
    %261 = sbr.rel (0) target = $region25
  $region24: #{qmix_forward.1} parent=0 // pred_region
    _
  $region25: #{qmix_forward.1} parent=0 // pred_fallthru
    _
  // Predicated region
  $region26: #{qmix_forward.1} parent=0 // pred_check
    _
  $region27: #{qmix_forward.1} parent=0 // pred_check_branch
    %263 = sbr.rel (0) target = $region29
  $region28: #{qmix_forward.1} parent=0 // pred_region
    _
  $region29: #{qmix_forward.1} parent=0 // pred_fallthru
    _

</llo_original>
